<compile_context>
chip_gen: v5e
topology: v5e:2x2
jax: 0.10.0
libtpu: 0.0.40
codegen_flags: <defaults>
</compile_context>

<pallas_src>
import functools

import jax
import jax.numpy as jnp
from jax.experimental import pallas as pl
from jax.experimental.pallas import tpu as pltpu


def _round_up(a: int, b: int) -> int:
    return (a + b - 1) // b * b


def _xqx_kernel(q_ref, xk_ref, xi_ref, o_ref, acc_ref, *, tk: int):
    """One (TM, TK) tile of Q.

    q_ref  : (TM, TK)  tile of Q
    xk_ref : (1, TK)   lane-dense slice of x for this column block
    xi_ref : (TM, 1)   slice of x for this row block (only read on finalize)
    o_ref  : (8, 128)  per-row-block output slab (scalar broadcast into it)
    acc_ref: (TM, 128) f32 accumulator, resident across the k (reduction) axis
    """
    k = pl.program_id(1)
    nk = pl.num_programs(1)

    @pl.when(k == 0)
    def _():
        acc_ref[...] = jnp.zeros_like(acc_ref)

    q = q_ref[...].astype(jnp.float32)      # (TM, TK), cast after DMA
    xk = xk_ref[...].astype(jnp.float32)    # (1, TK), broadcast over sublanes
    prod = q * xk                           # VPU elementwise

    # Fold TK lanes down to 128 lanes with pure VPU adds (aligned static
    # slices); the cross-lane reduction itself is deferred to the last k step.
    contrib = prod[:, 0:128]
    for g in range(1, tk // 128):
        contrib = contrib + prod[:, g * 128:(g + 1) * 128]
    acc_ref[...] += contrib

    @pl.when(k == nk - 1)
    def _():
        xi = xi_ref[...].astype(jnp.float32)                         # (TM, 1)
        s = jnp.sum(xi * acc_ref[...], axis=(0, 1), keepdims=True)   # (1, 1)
        o_ref[...] = jnp.broadcast_to(s, o_ref.shape).astype(o_ref.dtype)


def integer_loss(Q: jax.Array, x: jax.Array) -> jax.Array:
    """x^T Q x.  Q: (N, N), x: (N, 1) -> (1, 1) float32."""
    N = Q.shape[0]
    assert Q.shape == (N, N), Q.shape
    assert x.shape == (N, 1), x.shape

    # Tile sizes: shrink to a single padded tile for small N.
    tm = min(512, _round_up(N, 8))
    tk = min(512, _round_up(N, 128))
    n_rows = _round_up(N, tm)
    n_cols = _round_up(N, tk)
    g_m = n_rows // tm
    g_k = n_cols // tk

    # Zero-pad up to the tile grid (zeros contribute nothing to x^T Q x).
    qp = Q
    if (n_rows, n_cols) != (N, N):
        qp = jnp.pad(Q, ((0, n_rows - N), (0, n_cols - N)))
    x_row = x.reshape(1, N)
    if n_cols != N:
        x_row = jnp.pad(x_row, ((0, 0), (0, n_cols - N)))
    x_col = x
    if n_rows != N:
        x_col = jnp.pad(x, ((0, n_rows - N), (0, 0)))

    itemsize = jnp.dtype(Q.dtype).itemsize
    out = pl.pallas_call(
        functools.partial(_xqx_kernel, tk=tk),
        out_shape=jax.ShapeDtypeStruct((8, g_m * 128), jnp.float32),
        grid_spec=pltpu.PrefetchScalarGridSpec(
            num_scalar_prefetch=0,
            grid=(g_m, g_k),
            in_specs=[
                pl.BlockSpec((tm, tk), lambda i, k: (i, k)),  # Q tile
                pl.BlockSpec((1, tk), lambda i, k: (0, k)),   # x, column factor
                pl.BlockSpec((tm, 1), lambda i, k: (i, 0)),   # x, row factor
            ],
            out_specs=pl.BlockSpec((8, 128), lambda i, k: (0, i)),
            scratch_shapes=[pltpu.VMEM((tm, 128), jnp.float32)],
        ),
        compiler_params=pltpu.CompilerParams(
            dimension_semantics=("parallel", "arbitrary"),
            vmem_limit_bytes=32 * 1024 * 1024,
        ),
        cost_estimate=pl.CostEstimate(
            flops=2 * N * N + 2 * N,
            transcendentals=0,
            bytes_accessed=N * N * itemsize + 2 * N * itemsize + 4,
        ),
    )(qp, x_row, x_col)

    # Each row block wrote its partial (broadcast) into its own (8, 128) slab;
    # pick one lane per slab and do the tiny final sum in XLA.
    return out[0, ::128].sum().reshape(1, 1)


if __name__ == "__main__":
    key = jax.random.PRNGKey(0)
    f = jax.jit(integer_loss)

    # 1) The exact module-spec case: N=2, x = [[10, -10]]^T.
    kq, key = jax.random.split(key)
    Q2 = jax.random.normal(kq, (2, 2), dtype=jnp.float32)
    x2 = jnp.array([[10.0], [-10.0]], dtype=jnp.float32)
    out2 = jax.block_until_ready(f(Q2, x2))
    ref2 = x2.T @ (Q2 @ x2)
    assert out2.shape == (1, 1), out2.shape
    assert abs(float(out2[0, 0]) - float(ref2[0, 0])) <= 1e-3, (out2, ref2)

    # 2) A multi-tile case (N=640 -> 2x2 grid after padding) exercising the
    #    k-axis accumulation and the per-row-block partial slabs.
    for n in (8, 640):
        kq, kx, key = jax.random.split(key, 3)
        Q = jax.random.normal(kq, (n, n), dtype=jnp.float32)
        x = jax.random.normal(kx, (n, 1), dtype=jnp.float32) * (10.0 if n <= 16 else 1.0)

        out = jax.block_until_ready(f(Q, x))

        ref = x.T @ (Q @ x)                                   # torch forward reference
        bound = jnp.abs(x).T @ (jnp.abs(Q) @ jnp.abs(x))      # f32 roundoff scale
        tol = 1e-5 * float(bound[0, 0]) + 1e-3

        assert out.shape == (1, 1), out.shape
        assert abs(float(out[0, 0]) - float(ref[0, 0])) <= tol, (out, ref, tol)

    print("KERNEL_OK")
</pallas_src>

<mosaic_0001>
module attributes {stable_mosaic.version = 11 : i64} {
  func.func @_xqx_kernel(%arg0: i32, %arg1: i32, %arg2: memref<8x128xf32, #tpu.memory_space<vmem>>, %arg3: memref<1x128xf32, #tpu.memory_space<vmem>>, %arg4: memref<8x1xf32, #tpu.memory_space<vmem>>, %arg5: memref<8x128xf32, #tpu.memory_space<vmem>>, %arg6: memref<8x128xf32, #tpu.memory_space<vmem>>) attributes {dimension_semantics = [#tpu.dimension_semantics<parallel>, #tpu.dimension_semantics<arbitrary>], iteration_bounds = array<i64: 1, 1>, scalar_prefetch = 0 : i64, scratch_operands = 1 : i64, tpu.core_type = #tpu.core_type<tc>, window_params = [{transform_indices = @transform_0, window_bounds = array<i64: 8, 128>}, {transform_indices = @transform_1, window_bounds = array<i64: 1, 128>}, {transform_indices = @transform_2, window_bounds = array<i64: 8, 1>}, {transform_indices = @transform_3, window_bounds = array<i64: 8, 128>}]} {
    %c0_i32 = arith.constant 0 : i32
    %0 = arith.cmpi eq, %arg1, %c0_i32 : i32
    %1 = arith.extui %0 : i1 to i32
    %c0_i32_0 = arith.constant 0 : i32
    %2 = arith.cmpi ne, %1, %c0_i32_0 : i32
    scf.if %2 {
      %cst = arith.constant 0.000000e+00 : f32
      %13 = vector.broadcast %cst : f32 to vector<8x128xf32>
      %c0_10 = arith.constant 0 : index
      %c0_11 = arith.constant 0 : index
      %14 = vector.load %arg6[%c0_10, %c0_11] : memref<8x128xf32, #tpu.memory_space<vmem>>, vector<8x128xf32>
      tpu.vector_store %arg6[%c0_10, %c0_11], %13 {strides = array<i32>} : memref<8x128xf32, #tpu.memory_space<vmem>>, vector<8x128xf32>,
    } else {
    }
    %c0 = arith.constant 0 : index
    %c0_1 = arith.constant 0 : index
    %3 = vector.load %arg2[%c0, %c0_1] : memref<8x128xf32, #tpu.memory_space<vmem>>, vector<8x128xf32>
    %c0_2 = arith.constant 0 : index
    %c0_3 = arith.constant 0 : index
    %4 = vector.load %arg3[%c0_2, %c0_3] : memref<1x128xf32, #tpu.memory_space<vmem>>, vector<1x128xf32>
    %5 = vector.broadcast %4 : vector<1x128xf32> to vector<8x128xf32>
    %6 = arith.mulf %3, %5 : vector<8x128xf32>
    %c0_4 = arith.constant 0 : index
    %c0_5 = arith.constant 0 : index
    %7 = vector.load %arg6[%c0_4, %c0_5] : memref<8x128xf32, #tpu.memory_space<vmem>>, vector<8x128xf32>
    %8 = arith.addf %7, %6 : vector<8x128xf32>
    %c0_6 = arith.constant 0 : index
    %c0_7 = arith.constant 0 : index
    %9 = vector.load %arg6[%c0_6, %c0_7] : memref<8x128xf32, #tpu.memory_space<vmem>>, vector<8x128xf32>
    tpu.vector_store %arg6[%c0_6, %c0_7], %8 {strides = array<i32>} : memref<8x128xf32, #tpu.memory_space<vmem>>, vector<8x128xf32>,
    %c0_i32_8 = arith.constant 0 : i32
    %10 = arith.cmpi eq, %arg1, %c0_i32_8 : i32
    %11 = arith.extui %10 : i1 to i32
    %c0_i32_9 = arith.constant 0 : i32
    %12 = arith.cmpi ne, %11, %c0_i32_9 : i32
    scf.if %12 {
      %c0_10 = arith.constant 0 : index
      %c0_11 = arith.constant 0 : index
      %13 = vector.load %arg4[%c0_10, %c0_11] : memref<8x1xf32, #tpu.memory_space<vmem>>, vector<8x1xf32>
      %c0_12 = arith.constant 0 : index
      %c0_13 = arith.constant 0 : index
      %14 = vector.load %arg6[%c0_12, %c0_13] : memref<8x128xf32, #tpu.memory_space<vmem>>, vector<8x128xf32>
      %15 = vector.broadcast %13 : vector<8x1xf32> to vector<8x128xf32>
      %16 = arith.mulf %15, %14 : vector<8x128xf32>
      %17 = vector.shape_cast %16 : vector<8x128xf32> to vector<1x8x128xf32>
      %cst = arith.constant dense<0.000000e+00> : vector<1xf32>
      %18 = vector.multi_reduction <add>, %17, %cst [1, 2] : vector<1x8x128xf32> to vector<1xf32>
      %19 = vector.shape_cast %18 : vector<1xf32> to vector<1x1x1xf32>
      %20 = vector.extract %19[0, 0, 0] : f32 from vector<1x1x1xf32>
      %21 = vector.broadcast %20 : f32 to vector<1x1xf32>
      %22 = vector.shape_cast %21 : vector<1x1xf32> to vector<1x1xf32>
      %23 = vector.broadcast %22 : vector<1x1xf32> to vector<8x128xf32>
      %c0_14 = arith.constant 0 : index
      %c0_15 = arith.constant 0 : index
      %24 = vector.load %arg5[%c0_14, %c0_15] : memref<8x128xf32, #tpu.memory_space<vmem>>, vector<8x128xf32>
      tpu.vector_store %arg5[%c0_14, %c0_15], %23 {strides = array<i32>} : memref<8x128xf32, #tpu.memory_space<vmem>>, vector<8x128xf32>,
    } else {
    }
    return
  }
  func.func @transform_0(%arg0: i32, %arg1: i32) -> (i32, i32) {
    %c0_i32 = arith.constant 0 : i32
    return %arg0, %arg1 : i32, i32
  }
  func.func @transform_1(%arg0: i32, %arg1: i32) -> (i32, i32) {
    %c0_i32 = arith.constant 0 : i32
    %c0_i32_0 = arith.constant 0 : i32
    return %c0_i32, %arg1 : i32, i32
  }
  func.func @transform_2(%arg0: i32, %arg1: i32) -> (i32, i32) {
    %c0_i32 = arith.constant 0 : i32
    %c0_i32_0 = arith.constant 0 : i32
    return %arg0, %c0_i32 : i32, i32
  }
  func.func @transform_3(%arg0: i32, %arg1: i32) -> (i32, i32) {
    %c0_i32 = arith.constant 0 : i32
    %c0_i32_0 = arith.constant 0 : i32
    return %c0_i32, %arg0 : i32, i32
  }
}

</mosaic_0001>

<llo_original>
// kernel: integer_loss.1
$region0: #{integer_loss.1}
  #allocation0 [shape = 'u32[]', space=smem, size = 0x4, offset = 0x4, fixed_abs, tag = 'smem constant byte address 0x4 - core index']
  #allocation1 [shape = 'u32[72,128]{1,0:T(1,128)}', space=vmem, size = 0x9000, scoped, tag = 'internal scratch']
  #allocation2 [shape = 'f32[8,128]{1,0:T(8,128)}', space=vmem, size = 0x1000, scoped, tag = 'scratch operand']
  %s0 = inlined_call_operand.vmem [shape: f32[8,128], index: 0, kind: input, shape index: {}]
  %s1 = inlined_call_operand.vmem [shape: f32[1,128], index: 1, kind: input, shape index: {}]
  %s2 = inlined_call_operand.vmem [shape: f32[8,1], index: 2, kind: input, shape index: {}]
  %s3 = inlined_call_operand.vmem [shape: f32[8,128], index: 3, kind: output, shape index: {}]
  %s4 = sld [smem:[#allocation0]]
  $region30: #{integer_loss.1} parent=0
    _
  %s6 = ssub.s32 1, %s4
  %s7 = scalar_select 0, %s6, %s4
  // Predicated region
  $region2: #{integer_loss.1} parent=0 // pred_check
    _
  $region3: #{integer_loss.1} parent=0 // pred_check_branch
    %9 = sbr.rel (0) target = $region5
  $region4: #{integer_loss.1} parent=0 // pred_region
    _
  $region5: #{integer_loss.1} parent=0 // pred_fallthru
    _
  // Predicated region
  $region6: #{integer_loss.1} parent=0 // pred_check
    _
  $region7: #{integer_loss.1} parent=0 // pred_check_branch
    %11 = sbr.rel (0) target = $region9
  $region8: #{integer_loss.1} parent=0 // pred_region
    _
  $region9: #{integer_loss.1} parent=0 // pred_fallthru
    _
  // Predicated region
  $region10: #{integer_loss.1} parent=0 // pred_check
    _
  $region11: #{integer_loss.1} parent=0 // pred_check_branch
    %13 = sbr.rel (0) target = $region13
  $region12: #{integer_loss.1} parent=0 // pred_region
    _
  $region13: #{integer_loss.1} parent=0 // pred_fallthru
    _
  %p14 = scmp.eq.s32.totalorder 0, 0
  // Predicated region
  $region14: #{integer_loss.1} parent=0 // pred_check
    %p15 = pneg %p14
  $region15: #{integer_loss.1} parent=0 // pred_check_branch
    %17 = sbr.rel (%p15) target = $region17
  $region16: #{integer_loss.1} parent=0 // pred_region
    %18 = vst [vmem:[#allocation2] sm:$0xff] 0.0
  $region17: #{integer_loss.1} parent=0 // pred_fallthru
    _
  %v19 = vld [vmem:[%s0] sm:$0xff]
  %v20 = vld [vmem:[%s1] sm:$0x1]
  %v22 = vperm.slane %v20, 0
  %v24 = vmul.f32 %v19, %v22
  %v25 = vld [vmem:[#allocation2] sm:$0xff]
  %v26 = vadd.f32 %v25, %v24
  %27 = vst [vmem:[#allocation2] sm:$0xff] %v26
  // Predicated region
  $region18: #{integer_loss.1} parent=0 // pred_check
    %p28 = pneg %p14
  $region19: #{integer_loss.1} parent=0 // pred_check_branch
    %30 = sbr.rel (%p28) target = $region21
  $region20: #{integer_loss.1} parent=0 // pred_region
    %v31 = vld [vmem:[%s2] sm:$0xff]
    %v32 = vld [vmem:[#allocation2] sm:$0xff]
    %34 = vset.pattern.permute.xlu0 0
    %35 = vperm.xlu0 %34, %v31
    %v36 = vpop.permute.xlu0 %35
    %v38 = vmul.f32 %v36, %v32
    %39 = vadd.xlane.f32.xlu0 %v38
    %v40 = vpop.xlane.xlu0 %39
    %v41 = vrot.slane %v40, 4
    %v42 = vadd.f32 %v40, %v41
    %v43 = vrot.slane %v42, 2
    %v44 = vadd.f32 %v42, %v43
    %v45 = vrot.slane %v44, 1
    %v46 = vadd.f32 %v44, %v45
    %s47 = vtos %v46
    %v48 = vstv %s47
    %49 = vst [vmem:[%s3] sm:$0xff] %v48
  $region21: #{integer_loss.1} parent=0 // pred_fallthru
    _
  // Predicated region
  $region22: #{integer_loss.1} parent=0 // pred_check
    _
  $region23: #{integer_loss.1} parent=0 // pred_check_branch
    %51 = sbr.rel (0) target = $region25
  $region24: #{integer_loss.1} parent=0 // pred_region
    _
  $region25: #{integer_loss.1} parent=0 // pred_fallthru
    _
  // Predicated region
  $region26: #{integer_loss.1} parent=0 // pred_check
    _
  $region27: #{integer_loss.1} parent=0 // pred_check_branch
    %53 = sbr.rel (0) target = $region29
  $region28: #{integer_loss.1} parent=0 // pred_region
    _
  $region29: #{integer_loss.1} parent=0 // pred_fallthru
    _

</llo_original>
